<compile_context>
chip_gen: v5e
topology: v5e:2x2
jax: 0.10.0
libtpu: 0.0.40
codegen_flags: <defaults>
</compile_context>

<pallas_src>
import functools

import jax
import jax.numpy as jnp
import numpy as np
from jax.experimental import pallas as pl
from jax.experimental.pallas import tpu as pltpu


def _softmax_ranking_loss_kernel(
    x_ref, t_ref, o_ref, m_sc, l_sc, ts_sc, tx_sc, *,
    n_rows, m_cols, n_blk, m_blk, n_steps,
):
    j = pl.program_id(0)   # lane-tile index (flattened non-softmax dims)
    k = pl.program_id(1)   # sublane-tile index (softmax dim 0, streamed)

    # ---- init per-column accumulators at the start of each column strip ----
    @pl.when(k == 0)
    def _():
        m_sc[...] = jnp.full_like(m_sc, -jnp.inf)
        l_sc[...] = jnp.zeros_like(l_sc)
        ts_sc[...] = jnp.zeros_like(ts_sc)
        tx_sc[...] = jnp.zeros_like(tx_sc)

    # Native-dtype loads, upcast on the VPU (bf16 inputs / int8 targets are
    # fine; "+1e-8" on inputs before softmax is shift-invariant -> dropped).
    x = x_ref[...].astype(jnp.float32)      # (n_blk, m_blk)
    t = t_ref[...].astype(jnp.float32)      # (n_blk, m_blk)

    if n_rows % n_blk != 0:
        # Static branch: only emitted when dim 0 has a ragged tail. Stale VMEM
        # rows in the last block must not poison max / denom / sums.
        row = jax.lax.broadcasted_iota(jnp.int32, (n_blk, m_blk), 0)
        rvalid = row < (n_rows - k * n_blk)
        t = jnp.where(rvalid, t, 0.0)
        x_max = jnp.where(rvalid, x, -jnp.inf)
        tx = t * jnp.where(rvalid, x, 0.0)
    else:
        x_max = x
        tx = t * x

    # ---- online (streaming) log-sum-exp over dim 0 --------------------------
    blk_max = jnp.max(x_max, axis=0, keepdims=True)                  # (1, m_blk)
    m_new = jnp.maximum(m_sc[...], blk_max)
    alpha = jnp.exp(m_sc[...] - m_new)
    l_sc[...] = alpha * l_sc[...] + jnp.sum(jnp.exp(x_max - m_new),
                                            axis=0, keepdims=True)
    m_sc[...] = m_new
    ts_sc[...] = ts_sc[...] + jnp.sum(t, axis=0, keepdims=True)
    tx_sc[...] = tx_sc[...] + jnp.sum(tx, axis=0, keepdims=True)

    # ---- finalize: per-column loss -> one partial sum per lane tile ---------
    @pl.when(k == n_steps - 1)
    def _():
        # -sum(log(softmax(x)) * t, 0) == lse * sum(t, 0) - sum(t * x, 0)
        # (inner epsilon of log(probs + 1e-8) dropped; see header note)
        lse = m_sc[...] + jnp.log(l_sc[...])                         # (1, m_blk)
        col_loss = lse * ts_sc[...] - tx_sc[...]
        if m_cols % m_blk != 0:
            lane = jax.lax.broadcasted_iota(jnp.int32, (1, m_blk), 1)
            col_loss = jnp.where(lane < (m_cols - j * m_blk), col_loss, 0.0)
        part = jnp.sum(col_loss, axis=1, keepdims=True)              # (1, 1)
        lane0 = jax.lax.broadcasted_iota(jnp.int32, (1, 128), 1)
        o_ref[...] = jnp.where(lane0 == 0, part, 0.0)                # lane 0 only


def softmax_ranking_loss(inputs, targets, *, n_block=None, m_block=None):
    """inputs, targets: identical shape; softmax over dim 0. Returns scalar loss.

    Pass bf16 inputs and/or int8 (one-hot) targets to halve HBM read traffic;
    all math is done in f32 on the VPU inside the kernel.
    """
    assert inputs.shape == targets.shape
    n = inputs.shape[0]
    m = int(np.prod(inputs.shape[1:])) if inputs.ndim > 1 else 1

    # Flatten non-softmax dims into the lane axis; keep native dtypes.
    x2 = inputs.reshape(n, m)
    t2 = targets.reshape(n, m)

    m_pad = int(pl.cdiv(m, 128)) * 128

    # ~2 MiB of f32 per input block. Live set: 2 inputs x 2 pipeline buffers
    # x 2 MiB + ~3 full-block f32 temps + tiny scratch -> well under the
    # 32 MiB scoped-VMEM budget (v7x physical VMEM is 64 MiB).
    blk_budget = 2 * 1024 * 1024

    if n_block is None:
        # Cap the sublane tile so the VMEM budget is never bypassed for huge N
        # (keeps lane tiles >= 512); the N axis is then streamed via the grid.
        n_blk = min(n, max(8, blk_budget // (4 * 512)))
    else:
        n_blk = min(n, int(n_block))
    if n_blk < n:
        n_blk = max(8, (n_blk // 8) * 8)        # divisible by 8 unless full-N

    if m_block is None:
        m_blk = (blk_budget // (4 * n_blk)) // 128 * 128
        m_blk = max(128, min(m_blk, m_pad))
        # v7x: prefer >= 2 lane tiles (both TensorCores issue DMAs) as long as
        # each half-block still carries >= ~1 MiB of payload.
        if int(pl.cdiv(m_pad, m_blk)) == 1 and m_pad >= 256:
            half = int(pl.cdiv(m_pad // 2, 128)) * 128
            if half * n_blk * 4 >= (1 << 20):
                m_blk = half
    else:
        m_blk = max(128, min((int(m_block) // 128) * 128, m_pad))

    num_m = int(pl.cdiv(m, m_blk))
    num_n = int(pl.cdiv(n, n_blk))

    kernel = functools.partial(
        _softmax_ranking_loss_kernel,
        n_rows=n, m_cols=m, n_blk=n_blk, m_blk=m_blk, n_steps=num_n,
    )

    partials = pl.pallas_call(
        kernel,
        out_shape=jax.ShapeDtypeStruct((1, num_m * 128), jnp.float32),
        grid_spec=pltpu.PrefetchScalarGridSpec(
            num_scalar_prefetch=0,
            grid=(num_m, num_n),                       # reduction axis last
            in_specs=[
                pl.BlockSpec((n_blk, m_blk), lambda j, k: (k, j)),
                pl.BlockSpec((n_blk, m_blk), lambda j, k: (k, j)),
            ],
            # One lane-dense 128-wide block per lane tile; only lane 0 carries
            # the partial sum, the rest are zeros (so a plain sum finishes it).
            out_specs=pl.BlockSpec((1, 128), lambda j, k: (0, j)),
            scratch_shapes=[pltpu.VMEM((1, m_blk), jnp.float32)] * 4,
        ),
        compiler_params=pltpu.CompilerParams(
            dimension_semantics=("parallel", "arbitrary"),
            vmem_limit_bytes=32 * 1024 * 1024,
        ),
    )(x2, t2)

    # Tiny final reduction (num_m * 128 floats, mostly zeros) in plain JAX.
    return jnp.sum(partials) / jnp.float32(m)


def _reference_loss(inputs, targets):
    # Exact PyTorch formula (both epsilons kept).
    x = inputs.astype(jnp.float32) + 1e-8
    probs = jax.nn.softmax(x, axis=0)
    loss = -jnp.sum(jnp.log(probs + 1e-8) * targets.astype(jnp.float32), axis=0)
    return jnp.mean(loss)


if __name__ == "__main__":
    key = jax.random.PRNGKey(0)
    k1, k2 = jax.random.split(key)

    # Ranking axis N=8 (softmax dim 0), M=300 items (non-multiple of 128 ->
    # exercises the lane-tail masking path).
    N, M = 8, 300
    inputs = jax.random.normal(k1, (N, M), dtype=jnp.float32)
    tgt_idx = jax.random.randint(k2, (M,), 0, N)
    targets = jax.nn.one_hot(tgt_idx, N, dtype=jnp.float32).T      # (N, M)

    ref = jax.block_until_ready(_reference_loss(inputs, targets))

    # 1) default tiling (single big block)
    loss = jax.block_until_ready(softmax_ranking_loss(inputs, targets))
    # 2) forced multi-lane-tile path ("parallel" grid + in-kernel partials)
    loss_mt = jax.block_until_ready(
        softmax_ranking_loss(inputs, targets, m_block=128))
    # 3) int8 one-hot targets (half the targets-side HBM read; exact values)
    loss_i8 = jax.block_until_ready(
        softmax_ranking_loss(inputs, targets.astype(jnp.int8)))

    for name, val in [("default", loss), ("m_block=128", loss_mt),
                      ("int8 targets", loss_i8)]:
        if not np.allclose(np.asarray(val), np.asarray(ref), rtol=1e-5, atol=1e-5):
            raise AssertionError(f"mismatch ({name}): pallas={val} ref={ref}")

    # Streamed-N (online LSE) path at small scale: N=20 with n_block=8 gives
    # 3 sublane steps including a ragged tail of 4 rows.
    N2, M2 = 20, 300
    kk1, kk2 = jax.random.split(jax.random.PRNGKey(1))
    inputs2 = jax.random.normal(kk1, (N2, M2), dtype=jnp.float32)
    targets2 = jax.nn.one_hot(
        jax.random.randint(kk2, (M2,), 0, N2), N2, dtype=jnp.float32).T
    ref2 = jax.block_until_ready(_reference_loss(inputs2, targets2))
    loss2 = jax.block_until_ready(
        softmax_ranking_loss(inputs2, targets2, n_block=8, m_block=128))
    if not np.allclose(np.asarray(loss2), np.asarray(ref2), rtol=1e-5, atol=1e-5):
        raise AssertionError(f"mismatch (streamed N): pallas={loss2} ref={ref2}")

    print("KERNEL_OK")
</pallas_src>

<mosaic_0001>
module attributes {stable_mosaic.version = 11 : i64} {
  func.func @_softmax_ranking_loss_kernel(%arg0: i32, %arg1: i32, %arg2: memref<8x384xf32, #tpu.memory_space<vmem>>, %arg3: memref<8x384xf32, #tpu.memory_space<vmem>>, %arg4: memref<1x128xf32, #tpu.memory_space<vmem>>, %arg5: memref<1x384xf32, #tpu.memory_space<vmem>>, %arg6: memref<1x384xf32, #tpu.memory_space<vmem>>, %arg7: memref<1x384xf32, #tpu.memory_space<vmem>>, %arg8: memref<1x384xf32, #tpu.memory_space<vmem>>) attributes {dimension_semantics = [#tpu.dimension_semantics<parallel>, #tpu.dimension_semantics<arbitrary>], iteration_bounds = array<i64: 1, 1>, scalar_prefetch = 0 : i64, scratch_operands = 4 : i64, tpu.core_type = #tpu.core_type<tc>, window_params = [{transform_indices = @transform_0, window_bounds = array<i64: 8, 384>}, {transform_indices = @transform_1, window_bounds = array<i64: 8, 384>}, {transform_indices = @transform_2, window_bounds = array<i64: 1, 128>}]} {
    %c0_i32 = arith.constant 0 : i32
    %0 = arith.cmpi eq, %arg1, %c0_i32 : i32
    %1 = arith.extui %0 : i1 to i32
    %c0_i32_0 = arith.constant 0 : i32
    %2 = arith.cmpi ne, %1, %c0_i32_0 : i32
    scf.if %2 {
      %cst_27 = arith.constant 0xFF800000 : f32
      %36 = vector.broadcast %cst_27 : f32 to vector<1x384xf32>
      %c0_28 = arith.constant 0 : index
      %c0_29 = arith.constant 0 : index
      %37 = vector.load %arg5[%c0_28, %c0_29] : memref<1x384xf32, #tpu.memory_space<vmem>>, vector<1x384xf32>
      tpu.vector_store %arg5[%c0_28, %c0_29], %36 {strides = array<i32>} : memref<1x384xf32, #tpu.memory_space<vmem>>, vector<1x384xf32>,
      %cst_30 = arith.constant 0.000000e+00 : f32
      %38 = vector.broadcast %cst_30 : f32 to vector<1x384xf32>
      %c0_31 = arith.constant 0 : index
      %c0_32 = arith.constant 0 : index
      %39 = vector.load %arg6[%c0_31, %c0_32] : memref<1x384xf32, #tpu.memory_space<vmem>>, vector<1x384xf32>
      tpu.vector_store %arg6[%c0_31, %c0_32], %38 {strides = array<i32>} : memref<1x384xf32, #tpu.memory_space<vmem>>, vector<1x384xf32>,
      %cst_33 = arith.constant 0.000000e+00 : f32
      %40 = vector.broadcast %cst_33 : f32 to vector<1x384xf32>
      %c0_34 = arith.constant 0 : index
      %c0_35 = arith.constant 0 : index
      %41 = vector.load %arg7[%c0_34, %c0_35] : memref<1x384xf32, #tpu.memory_space<vmem>>, vector<1x384xf32>
      tpu.vector_store %arg7[%c0_34, %c0_35], %40 {strides = array<i32>} : memref<1x384xf32, #tpu.memory_space<vmem>>, vector<1x384xf32>,
      %cst_36 = arith.constant 0.000000e+00 : f32
      %42 = vector.broadcast %cst_36 : f32 to vector<1x384xf32>
      %c0_37 = arith.constant 0 : index
      %c0_38 = arith.constant 0 : index
      %43 = vector.load %arg8[%c0_37, %c0_38] : memref<1x384xf32, #tpu.memory_space<vmem>>, vector<1x384xf32>
      tpu.vector_store %arg8[%c0_37, %c0_38], %42 {strides = array<i32>} : memref<1x384xf32, #tpu.memory_space<vmem>>, vector<1x384xf32>,
    } else {
    }
    %c0 = arith.constant 0 : index
    %c0_1 = arith.constant 0 : index
    %3 = vector.load %arg2[%c0, %c0_1] : memref<8x384xf32, #tpu.memory_space<vmem>>, vector<8x384xf32>
    %c0_2 = arith.constant 0 : index
    %c0_3 = arith.constant 0 : index
    %4 = vector.load %arg3[%c0_2, %c0_3] : memref<8x384xf32, #tpu.memory_space<vmem>>, vector<8x384xf32>
    %5 = arith.mulf %4, %3 : vector<8x384xf32>
    %cst = arith.constant dense<0xFF800000> : vector<384xf32>
    %6 = vector.multi_reduction <maximumf>, %3, %cst [0] : vector<8x384xf32> to vector<384xf32>
    %7 = vector.shape_cast %6 : vector<384xf32> to vector<1x384xf32>
    %c0_4 = arith.constant 0 : index
    %c0_5 = arith.constant 0 : index
    %8 = vector.load %arg5[%c0_4, %c0_5] : memref<1x384xf32, #tpu.memory_space<vmem>>, vector<1x384xf32>
    %9 = arith.maximumf %8, %7 : vector<1x384xf32>
    %c0_6 = arith.constant 0 : index
    %c0_7 = arith.constant 0 : index
    %10 = vector.load %arg5[%c0_6, %c0_7] : memref<1x384xf32, #tpu.memory_space<vmem>>, vector<1x384xf32>
    %11 = arith.subf %10, %9 : vector<1x384xf32>
    %12 = math.exp %11 : vector<1x384xf32>
    %c0_8 = arith.constant 0 : index
    %c0_9 = arith.constant 0 : index
    %13 = vector.load %arg6[%c0_8, %c0_9] : memref<1x384xf32, #tpu.memory_space<vmem>>, vector<1x384xf32>
    %14 = arith.mulf %12, %13 : vector<1x384xf32>
    %15 = vector.broadcast %9 : vector<1x384xf32> to vector<8x384xf32>
    %16 = arith.subf %3, %15 : vector<8x384xf32>
    %17 = math.exp %16 : vector<8x384xf32>
    %cst_10 = arith.constant dense<0.000000e+00> : vector<384xf32>
    %18 = vector.multi_reduction <add>, %17, %cst_10 [0] : vector<8x384xf32> to vector<384xf32>
    %19 = vector.shape_cast %18 : vector<384xf32> to vector<1x384xf32>
    %20 = arith.addf %14, %19 : vector<1x384xf32>
    %c0_11 = arith.constant 0 : index
    %c0_12 = arith.constant 0 : index
    %21 = vector.load %arg6[%c0_11, %c0_12] : memref<1x384xf32, #tpu.memory_space<vmem>>, vector<1x384xf32>
    tpu.vector_store %arg6[%c0_11, %c0_12], %20 {strides = array<i32>} : memref<1x384xf32, #tpu.memory_space<vmem>>, vector<1x384xf32>,
    %c0_13 = arith.constant 0 : index
    %c0_14 = arith.constant 0 : index
    %22 = vector.load %arg5[%c0_13, %c0_14] : memref<1x384xf32, #tpu.memory_space<vmem>>, vector<1x384xf32>
    tpu.vector_store %arg5[%c0_13, %c0_14], %9 {strides = array<i32>} : memref<1x384xf32, #tpu.memory_space<vmem>>, vector<1x384xf32>,
    %c0_15 = arith.constant 0 : index
    %c0_16 = arith.constant 0 : index
    %23 = vector.load %arg7[%c0_15, %c0_16] : memref<1x384xf32, #tpu.memory_space<vmem>>, vector<1x384xf32>
    %cst_17 = arith.constant dense<0.000000e+00> : vector<384xf32>
    %24 = vector.multi_reduction <add>, %4, %cst_17 [0] : vector<8x384xf32> to vector<384xf32>
    %25 = vector.shape_cast %24 : vector<384xf32> to vector<1x384xf32>
    %26 = arith.addf %23, %25 : vector<1x384xf32>
    %c0_18 = arith.constant 0 : index
    %c0_19 = arith.constant 0 : index
    %27 = vector.load %arg7[%c0_18, %c0_19] : memref<1x384xf32, #tpu.memory_space<vmem>>, vector<1x384xf32>
    tpu.vector_store %arg7[%c0_18, %c0_19], %26 {strides = array<i32>} : memref<1x384xf32, #tpu.memory_space<vmem>>, vector<1x384xf32>,
    %c0_20 = arith.constant 0 : index
    %c0_21 = arith.constant 0 : index
    %28 = vector.load %arg8[%c0_20, %c0_21] : memref<1x384xf32, #tpu.memory_space<vmem>>, vector<1x384xf32>
    %cst_22 = arith.constant dense<0.000000e+00> : vector<384xf32>
    %29 = vector.multi_reduction <add>, %5, %cst_22 [0] : vector<8x384xf32> to vector<384xf32>
    %30 = vector.shape_cast %29 : vector<384xf32> to vector<1x384xf32>
    %31 = arith.addf %28, %30 : vector<1x384xf32>
    %c0_23 = arith.constant 0 : index
    %c0_24 = arith.constant 0 : index
    %32 = vector.load %arg8[%c0_23, %c0_24] : memref<1x384xf32, #tpu.memory_space<vmem>>, vector<1x384xf32>
    tpu.vector_store %arg8[%c0_23, %c0_24], %31 {strides = array<i32>} : memref<1x384xf32, #tpu.memory_space<vmem>>, vector<1x384xf32>,
    %c0_i32_25 = arith.constant 0 : i32
    %33 = arith.cmpi eq, %arg1, %c0_i32_25 : i32
    %34 = arith.extui %33 : i1 to i32
    %c0_i32_26 = arith.constant 0 : i32
    %35 = arith.cmpi ne, %34, %c0_i32_26 : i32
    scf.if %35 {
      %c0_27 = arith.constant 0 : index
      %c0_28 = arith.constant 0 : index
      %36 = vector.load %arg5[%c0_27, %c0_28] : memref<1x384xf32, #tpu.memory_space<vmem>>, vector<1x384xf32>
      %c0_29 = arith.constant 0 : index
      %c0_30 = arith.constant 0 : index
      %37 = vector.load %arg6[%c0_29, %c0_30] : memref<1x384xf32, #tpu.memory_space<vmem>>, vector<1x384xf32>
      %38 = math.log %37 : vector<1x384xf32>
      %39 = arith.addf %36, %38 : vector<1x384xf32>
      %c0_31 = arith.constant 0 : index
      %c0_32 = arith.constant 0 : index
      %40 = vector.load %arg7[%c0_31, %c0_32] : memref<1x384xf32, #tpu.memory_space<vmem>>, vector<1x384xf32>
      %41 = arith.mulf %39, %40 : vector<1x384xf32>
      %c0_33 = arith.constant 0 : index
      %c0_34 = arith.constant 0 : index
      %42 = vector.load %arg8[%c0_33, %c0_34] : memref<1x384xf32, #tpu.memory_space<vmem>>, vector<1x384xf32>
      %43 = arith.subf %41, %42 : vector<1x384xf32>
      %44 = tpu.iota {dimensions = array<i32: 1>} : vector<1x384xi32>
      %c384_i32 = arith.constant 384 : i32
      %45 = arith.muli %arg0, %c384_i32 : i32
      %c300_i32 = arith.constant 300 : i32
      %46 = arith.subi %c300_i32, %45 : i32
      %47 = vector.broadcast %46 : i32 to vector<1x384xi32>
      %48 = arith.cmpi slt, %44, %47 : vector<1x384xi32>
      %cst_35 = arith.constant 0.000000e+00 : f32
      %49 = vector.broadcast %cst_35 : f32 to vector<1x384xf32>
      %50 = arith.select %48, %43, %49 : vector<1x384xi1>, vector<1x384xf32>
      %cst_36 = arith.constant dense<0.000000e+00> : vector<1xf32>
      %51 = vector.multi_reduction <add>, %50, %cst_36 [1] : vector<1x384xf32> to vector<1xf32>
      %52 = vector.shape_cast %51 : vector<1xf32> to vector<1x1xf32>
      %53 = tpu.iota {dimensions = array<i32: 1>} : vector<1x128xi32>
      %c0_i32_37 = arith.constant 0 : i32
      %54 = vector.broadcast %c0_i32_37 : i32 to vector<1x128xi32>
      %55 = arith.cmpi eq, %53, %54 : vector<1x128xi32>
      %cst_38 = arith.constant 0.000000e+00 : f32
      %56 = vector.shape_cast %52 : vector<1x1xf32> to vector<1x1xf32>
      %57 = vector.broadcast %56 : vector<1x1xf32> to vector<1x128xf32>
      %58 = vector.broadcast %cst_38 : f32 to vector<1x128xf32>
      %59 = arith.select %55, %57, %58 : vector<1x128xi1>, vector<1x128xf32>
      %c0_39 = arith.constant 0 : index
      %c0_40 = arith.constant 0 : index
      %60 = vector.load %arg4[%c0_39, %c0_40] : memref<1x128xf32, #tpu.memory_space<vmem>>, vector<1x128xf32>
      tpu.vector_store %arg4[%c0_39, %c0_40], %59 {strides = array<i32>} : memref<1x128xf32, #tpu.memory_space<vmem>>, vector<1x128xf32>,
    } else {
    }
    return
  }
  func.func @transform_0(%arg0: i32, %arg1: i32) -> (i32, i32) {
    %c0_i32 = arith.constant 0 : i32
    return %arg1, %arg0 : i32, i32
  }
  func.func @transform_1(%arg0: i32, %arg1: i32) -> (i32, i32) {
    %c0_i32 = arith.constant 0 : i32
    return %arg1, %arg0 : i32, i32
  }
  func.func @transform_2(%arg0: i32, %arg1: i32) -> (i32, i32) {
    %c0_i32 = arith.constant 0 : i32
    %c0_i32_0 = arith.constant 0 : i32
    return %c0_i32, %arg0 : i32, i32
  }
}

</mosaic_0001>

<llo_original>
// kernel: tpu_custom_call.1
$region0: #{tpu_custom_call.1}
  #allocation0 [shape = 'u32[]', space=smem, size = 0x4, offset = 0x4, fixed_abs, tag = 'smem constant byte address 0x4 - core index']
  #allocation1 [shape = 'u32[72,128]{1,0:T(1,128)}', space=vmem, size = 0x9000, scoped, tag = 'internal scratch']
  #allocation2 [shape = 'f32[1,384]{1,0:T(1,128)}', space=vmem, size = 0x600, scoped, tag = 'scratch operand']
  #allocation3 [shape = 'f32[1,384]{1,0:T(1,128)}', space=vmem, size = 0x600, scoped, tag = 'scratch operand']
  #allocation4 [shape = 'f32[1,384]{1,0:T(1,128)}', space=vmem, size = 0x600, scoped, tag = 'scratch operand']
  #allocation5 [shape = 'f32[1,384]{1,0:T(1,128)}', space=vmem, size = 0x600, scoped, tag = 'scratch operand']
  %s0 = inlined_call_operand.hbm [shape: f32[8,300], index: 0, kind: input, shape index: {}]
  %s1 = inlined_call_operand.hbm [shape: f32[8,300], index: 1, kind: input, shape index: {}]
  %s2 = inlined_call_operand.hbm [shape: f32[1,128], index: 2, kind: output, shape index: {}]
  %s3 = sld [smem:[#allocation0]]
  $region34: #{tpu_custom_call.1} parent=0
    _
  %s5 = ssub.s32 1, %s3
  %s6 = scalar_select 0, %s5, %s3
  $region1: #{tpu_custom_call.1} parent=0
    #allocation6 [shape = 'u8[12288]{0}', space=vmem, size = 0x3000, scoped, tag = 'input window, operand 0, single buffered']
    #allocation7 [shape = 's32[1]{0}', space=sflag, size = 0x4, scoped, tag = 'scoped memory for tpu_custom_call.1']
    #allocation8 [shape = 's32[1]{0}', space=sflag, size = 0x4, scoped, tag = 'scoped memory for tpu_custom_call.1']
    #allocation9 [shape = 'u8[12288]{0}', space=vmem, size = 0x3000, scoped, tag = 'input window, operand 1, single buffered']
    #allocation10 [shape = 's32[1]{0}', space=sflag, size = 0x4, scoped, tag = 'scoped memory for tpu_custom_call.1']
    #allocation11 [shape = 'u8[512]{0}', space=vmem, size = 0x400, scoped, tag = 'output window, operand 0, single buffered']
    %7 = vsyncpa [#allocation7], 0
    %8 = vsyncpa [#allocation10], 0
    %9 = vsyncpa [#allocation8], 0
    // Predicated region
    $region2: #{tpu_custom_call.1} parent=1 // pred_check
      _
    $region3: #{tpu_custom_call.1} parent=1 // pred_check_branch
      %11 = sbr.rel (0) target = $region5
    $region4: #{tpu_custom_call.1} parent=1 // pred_region
      %13 = vsyncadd [#allocation7], 0
      %s15 = sshll.u32 %s0, 4
      %s16 = int_to_ptr.hbm [resolvable:$true] %s15
      %s17 = sshll.u32 [#allocation6], 4
      %s18 = int_to_ptr.vmem [resolvable:$true] %s17
      %20 = dma.hbm_to_vmem [thread:$0]  %s16, 384, %s18, [#allocation7]
    $region5: #{tpu_custom_call.1} parent=1 // pred_fallthru
      _
    // Predicated region
    $region6: #{tpu_custom_call.1} parent=1 // pred_check
      _
    $region7: #{tpu_custom_call.1} parent=1 // pred_check_branch
      %22 = sbr.rel (0) target = $region9
    $region8: #{tpu_custom_call.1} parent=1 // pred_region
      %24 = vsyncadd [#allocation10], 0
      %s26 = sshll.u32 %s1, 4
      %s27 = int_to_ptr.hbm [resolvable:$true] %s26
      %s28 = sshll.u32 [#allocation9], 4
      %s29 = int_to_ptr.vmem [resolvable:$true] %s28
      %31 = dma.hbm_to_vmem [thread:$0]  %s27, 384, %s29, [#allocation10]
    $region9: #{tpu_custom_call.1} parent=1 // pred_fallthru
      _
    // Predicated region
    $region10: #{tpu_custom_call.1} parent=1 // pred_check
      _
    $region11: #{tpu_custom_call.1} parent=1 // pred_check_branch
      %33 = sbr.rel (0) target = $region13
    $region12: #{tpu_custom_call.1} parent=1 // pred_region
      %35 = dma.done [#allocation7], 384
    $region13: #{tpu_custom_call.1} parent=1 // pred_fallthru
      _
    // Predicated region
    $region14: #{tpu_custom_call.1} parent=1 // pred_check
      _
    $region15: #{tpu_custom_call.1} parent=1 // pred_check_branch
      %37 = sbr.rel (0) target = $region17
    $region16: #{tpu_custom_call.1} parent=1 // pred_region
      %39 = dma.done [#allocation10], 384
    $region17: #{tpu_custom_call.1} parent=1 // pred_fallthru
      _
    %p40 = scmp.eq.s32.totalorder 0, 0
    // Predicated region
    $region18: #{tpu_custom_call.1} parent=1 // pred_check
      %p41 = pneg %p40
    $region19: #{tpu_custom_call.1} parent=1 // pred_check_branch
      %43 = sbr.rel (%p41) target = $region21
    $region20: #{tpu_custom_call.1} parent=1 // pred_region
      %v44 = vlaneseq
      %vm45 = vcmp.ge.s32.totalorder %v44, 0
      %vm46 = vcmp.lt.s32.totalorder %v44, 384
      %vm47 = vmand %vm45, %vm46
      %48 = vst.msk [vmem:[#allocation2] sm:$0x7] %vm47, -inf
      %49 = vst.msk [vmem:[#allocation3] sm:$0x7] %vm47, 0.0
      %50 = vst.msk [vmem:[#allocation4] sm:$0x7] %vm47, 0.0
      %51 = vst.msk [vmem:[#allocation5] sm:$0x7] %vm47, 0.0
    $region21: #{tpu_custom_call.1} parent=1 // pred_fallthru
      _
    %v52 = vld [vmem:[#allocation6] sm:$0xff]
    %v53 = vld [vmem:[#allocation6 + $0x8] sm:$0xff]
    %v54 = vld [vmem:[#allocation6 + $0x10] sm:$0xff]
    %v55 = vld [vmem:[#allocation9] sm:$0xff]
    %v56 = vld [vmem:[#allocation9 + $0x8] sm:$0xff]
    %v57 = vld [vmem:[#allocation9 + $0x10] sm:$0xff]
    %v58 = vmul.f32 %v55, %v52
    %v59 = vmul.f32 %v56, %v53
    %v60 = vmul.f32 %v57, %v54
    %v61 = vrot.slane %v52, 4
    %v62 = vmax.f32 %v52, %v61
    %v63 = vrot.slane %v62, 2
    %v64 = vmax.f32 %v62, %v63
    %v65 = vrot.slane %v64, 1
    %v66 = vmax.f32 %v64, %v65
    %v67 = vrot.slane %v53, 4
    %v68 = vmax.f32 %v53, %v67
    %v69 = vrot.slane %v68, 2
    %v70 = vmax.f32 %v68, %v69
    %v71 = vrot.slane %v70, 1
    %v72 = vmax.f32 %v70, %v71
    %v73 = vrot.slane %v54, 4
    %v74 = vmax.f32 %v54, %v73
    %v75 = vrot.slane %v74, 2
    %v76 = vmax.f32 %v74, %v75
    %v77 = vrot.slane %v76, 1
    %v78 = vmax.f32 %v76, %v77
    %v79 = vld [vmem:[#allocation2] sm:$0x7]
    %v83 = vrot.slane %v72, 7
    %v84 = vrot.slane %v78, 6
    %vm85 = vcmask 1040384
    %v86 = vsel %vm85, %v66, %v83
    %vm87 = vcmask 1041408
    %v88 = vsel %vm87, %v86, %v84
    %v90 = vmax.f32 %v79, %v88
    %v91 = vsub.f32 %v79, %v90
    %v92 = vmul.f32 %v91, 1.442695
    %v93 = vpow.pop %v92
    %v94 = vld [vmem:[#allocation3] sm:$0x7]
    %v95 = vmul.f32 %v93, %v94
    %v97 = vperm.slane %v90, 0
    %v98 = vperm.slane %v90, 1
    %v99 = vperm.slane %v90, 2
    %v103 = vsub.f32 %v52, %v97
    %v104 = vsub.f32 %v53, %v98
    %v105 = vsub.f32 %v54, %v99
    %v106 = vmul.f32 %v103, 1.442695
    %v107 = vpow.pop %v106
    %v108 = vmul.f32 %v104, 1.442695
    %v109 = vpow.pop %v108
    %v110 = vmul.f32 %v105, 1.442695
    %v111 = vpow.pop %v110
    %v112 = vrot.slane %v107, 4
    %v113 = vadd.f32 %v107, %v112
    %v114 = vrot.slane %v113, 2
    %v115 = vadd.f32 %v113, %v114
    %v116 = vrot.slane %v115, 1
    %v117 = vadd.f32 %v115, %v116
    %v118 = vrot.slane %v109, 4
    %v119 = vadd.f32 %v109, %v118
    %v120 = vrot.slane %v119, 2
    %v121 = vadd.f32 %v119, %v120
    %v122 = vrot.slane %v121, 1
    %v123 = vadd.f32 %v121, %v122
    %v124 = vrot.slane %v111, 4
    %v125 = vadd.f32 %v111, %v124
    %v126 = vrot.slane %v125, 2
    %v127 = vadd.f32 %v125, %v126
    %v128 = vrot.slane %v127, 1
    %v129 = vadd.f32 %v127, %v128
    %v133 = vrot.slane %v123, 7
    %v134 = vrot.slane %v129, 6
    %v135 = vsel %vm85, %v117, %v133
    %v136 = vsel %vm87, %v135, %v134
    %v138 = vadd.f32 %v95, %v136
    %v139 = vlaneseq
    %vm140 = vcmp.ge.s32.totalorder %v139, 0
    %vm141 = vcmp.lt.s32.totalorder %v139, 384
    %vm142 = vmand %vm140, %vm141
    %143 = vst.msk [vmem:[#allocation3] sm:$0x7] %vm142, %v138
    %144 = vst.msk [vmem:[#allocation2] sm:$0x7] %vm142, %v90
    %v145 = vld [vmem:[#allocation4] sm:$0x7]
    %v146 = vrot.slane %v55, 4
    %v147 = vadd.f32 %v55, %v146
    %v148 = vrot.slane %v147, 2
    %v149 = vadd.f32 %v147, %v148
    %v150 = vrot.slane %v149, 1
    %v151 = vadd.f32 %v149, %v150
    %v152 = vrot.slane %v56, 4
    %v153 = vadd.f32 %v56, %v152
    %v154 = vrot.slane %v153, 2
    %v155 = vadd.f32 %v153, %v154
    %v156 = vrot.slane %v155, 1
    %v157 = vadd.f32 %v155, %v156
    %v158 = vrot.slane %v57, 4
    %v159 = vadd.f32 %v57, %v158
    %v160 = vrot.slane %v159, 2
    %v161 = vadd.f32 %v159, %v160
    %v162 = vrot.slane %v161, 1
    %v163 = vadd.f32 %v161, %v162
    %v167 = vrot.slane %v157, 7
    %v168 = vrot.slane %v163, 6
    %v169 = vsel %vm85, %v151, %v167
    %v170 = vsel %vm87, %v169, %v168
    %v172 = vadd.f32 %v145, %v170
    %173 = vst.msk [vmem:[#allocation4] sm:$0x7] %vm142, %v172
    %v174 = vld [vmem:[#allocation5] sm:$0x7]
    %v175 = vrot.slane %v58, 4
    %v176 = vadd.f32 %v58, %v175
    %v177 = vrot.slane %v176, 2
    %v178 = vadd.f32 %v176, %v177
    %v179 = vrot.slane %v178, 1
    %v180 = vadd.f32 %v178, %v179
    %v181 = vrot.slane %v59, 4
    %v182 = vadd.f32 %v59, %v181
    %v183 = vrot.slane %v182, 2
    %v184 = vadd.f32 %v182, %v183
    %v185 = vrot.slane %v184, 1
    %v186 = vadd.f32 %v184, %v185
    %v187 = vrot.slane %v60, 4
    %v188 = vadd.f32 %v60, %v187
    %v189 = vrot.slane %v188, 2
    %v190 = vadd.f32 %v188, %v189
    %v191 = vrot.slane %v190, 1
    %v192 = vadd.f32 %v190, %v191
    %v196 = vrot.slane %v186, 7
    %v197 = vrot.slane %v192, 6
    %v198 = vsel %vm85, %v180, %v196
    %v199 = vsel %vm87, %v198, %v197
    %v201 = vadd.f32 %v174, %v199
    %202 = vst.msk [vmem:[#allocation5] sm:$0x7] %vm142, %v201
    // Predicated region
    $region22: #{tpu_custom_call.1} parent=1 // pred_check
      %p203 = pneg %p40
    $region23: #{tpu_custom_call.1} parent=1 // pred_check_branch
      %205 = sbr.rel (%p203) target = $region25
    $region24: #{tpu_custom_call.1} parent=1 // pred_region
      %v206 = vld [vmem:[#allocation2] sm:$0x7]
      %v207 = vld [vmem:[#allocation3] sm:$0x7]
      %v208 = vlog2.pop %v207
      %v209 = vmul.f32 %v208, 0.6931472
      %v210 = vadd.f32 %v206, %v209
      %v211 = vld [vmem:[#allocation4] sm:$0x7]
      %v212 = vmul.f32 %v210, %v211
      %v213 = vld [vmem:[#allocation5] sm:$0x7]
      %v214 = vsub.f32 %v212, %v213
      %v215 = vlaneseq
      %v216 = vand.u32 %v215, 127
      %v217 = vadd.s32 %v216, 128
      %v218 = vadd.s32 %v216, 256
      %s219 = smul.u32 0, 384
      %s220 = ssub.s32 300, %s219
      %v221 = vstv %s220
      %vm222 = vcmp.lt.s32.totalorder %v216, %v221
      %vm223 = vcmp.lt.s32.totalorder %v217, %v221
      %vm224 = vcmp.lt.s32.totalorder %v218, %v221
      %v226 = vperm.slane %v214, 0
      %v227 = vperm.slane %v214, 1
      %v228 = vperm.slane %v214, 2
      %v232 = vsel %vm222, %v226, 0.0
      %v233 = vsel %vm223, %v227, 0.0
      %v234 = vsel %vm224, %v228, 0.0
      %v235 = vsel %vm85, %v232, 0.0
      %v236 = vsel %vm85, %v233, 0.0
      %v237 = vadd.f32 %v235, %v236
      %v238 = vsel %vm85, %v234, 0.0
      %v239 = vadd.f32 %v237, %v238
      %240 = vadd.xlane.f32.xlu0 %v239
      %v241 = vpop.xlane.xlu0 %240
      %vm242 = vcmp.eq.s32.totalorder %v216, 0
      %v243 = vsel %vm242, %v241, 0.0
      %244 = vst [vmem:[#allocation11] sm:$0x1] %v243
    $region25: #{tpu_custom_call.1} parent=1 // pred_fallthru
      _
    // Predicated region
    $region26: #{tpu_custom_call.1} parent=1 // pred_check
      _
    $region27: #{tpu_custom_call.1} parent=1 // pred_check_branch
      %246 = sbr.rel (0) target = $region29
    $region28: #{tpu_custom_call.1} parent=1 // pred_region
      %248 = vsyncadd [#allocation8], 0
      %s250 = sshll.u32 [#allocation11], 4
      %s251 = int_to_ptr.vmem [resolvable:$true] %s250
      %s252 = sshll.u32 %s2, 4
      %s253 = int_to_ptr.hbm [resolvable:$true] %s252
      %255 = dma.vmem_to_hbm [thread:$0]  %s251, 16, %s253, [#allocation8]
    $region29: #{tpu_custom_call.1} parent=1 // pred_fallthru
      _
    // Predicated region
    $region30: #{tpu_custom_call.1} parent=1 // pred_check
      _
    $region31: #{tpu_custom_call.1} parent=1 // pred_check_branch
      %257 = sbr.rel (0) target = $region33
    $region32: #{tpu_custom_call.1} parent=1 // pred_region
      %259 = dma.done [#allocation8], 16
    $region33: #{tpu_custom_call.1} parent=1 // pred_fallthru
      _
    %260 = vsyncpa [#allocation7], 1
    %261 = vsyncpa [#allocation10], 1
    %262 = vsyncpa [#allocation8], 1

</llo_original>
